<compile_context>
chip_gen: v7x
topology: tpu7x:2x2x1
jax: 0.10.0
libtpu: 0.0.40
codegen_flags: <defaults>
</compile_context>

<pallas_src>
import jax
import jax.numpy as jnp
from jax.experimental import pallas as pl
from jax.experimental.pallas import tpu as pltpu


def _mylinear_kernel(x_ref, w_ref, b_ref, o_ref):
    x = x_ref[...]                                   # (bB, D_in)   f32
    # Square in f32 (safe on v5e, exact), then build the fused LHS.
    xx = jnp.concatenate([x, x * x], axis=-1)        # (bB, 2*D_in) f32
    # Single MXU matmul: bf16 inputs, f32 accumulation.
    y = jnp.dot(xx.astype(w_ref.dtype), w_ref[...],
                preferred_element_type=jnp.float32)  # (bB, Dp)     f32
    o_ref[...] = (y + b_ref[...]).astype(o_ref.dtype)


def prepare_mylinear_params(w1, w2, b, *, compute_dtype=jnp.bfloat16):
    """One-time parameter packing (NOT in the per-call hot path).

    w1, w2: (D_out, D_in) f32, b: (D_out,) f32
    Returns:
      wcat: (2*D_in, Dp) compute_dtype  -- concatenated, transposed, lane-padded
      bpad: (1, Dp) f32                 -- zero-padded bias row
      d_out: original output_dim (for slicing the padded result)
    """
    d_out, d_in = w1.shape
    dp = ((d_out + 127) // 128) * 128            # lane-dense output width
    wcat = jnp.concatenate([w1, w2], axis=1).T   # (2*D_in, D_out)
    wcat = jnp.pad(wcat, ((0, 0), (0, dp - d_out))).astype(compute_dtype)
    bpad = jnp.pad(b, (0, dp - d_out)).reshape(1, dp).astype(jnp.float32)
    return wcat, bpad, d_out


def _pick_batch_block(batch):
    # Biggest MXU/sublane-friendly batch tile that divides the batch.
    for cand in (512, 256, 128):
        if batch % cand == 0:
            return cand
    return batch   # tiny batches: single full block


def mylinear_forward(x, wcat, bpad, output_dim):
    """x: (B, D_in) f32; wcat/bpad from prepare_mylinear_params -> (B, output_dim)."""
    batch, d_in = x.shape
    k, dp = wcat.shape                            # k = 2*D_in, dp = padded D_out

    block_b = _pick_batch_block(batch)
    grid = (batch // block_b,)

    y_pad = pl.pallas_call(
        _mylinear_kernel,
        out_shape=jax.ShapeDtypeStruct((batch, dp), x.dtype),
        grid=grid,
        in_specs=[
            pl.BlockSpec((block_b, d_in), lambda i: (i, 0)),   # x tile per batch block
            pl.BlockSpec((k, dp), lambda i: (0, 0)),           # fused weights (resident)
            pl.BlockSpec((1, dp), lambda i: (0, 0)),           # bias row (resident)
        ],
        out_specs=pl.BlockSpec((block_b, dp), lambda i: (i, 0)),
        compiler_params=pltpu.CompilerParams(
            dimension_semantics=("parallel",),     # batch tiles shard across TCs (v7x)
            vmem_limit_bytes=32 * 1024 * 1024,     # explicit, safe on v7x's 64 MiB VMEM
        ),
    )(x, wcat, bpad)

    # Drop the lane padding (cheap XLA slice outside the kernel).
    return y_pad[:, :output_dim]


if __name__ == "__main__":
    key = jax.random.PRNGKey(0)
    k_x, k_w1, k_w2 = jax.random.split(key, 3)

    batch, input_dim, output_dim = 8, 32, 16

    # Deterministic parameter init mirroring the module's __init__:
    #   w1, w2 ~ N(0, 0.01), shape (output_dim, input_dim); b = ones(output_dim)
    w1 = 0.01 * jax.random.normal(k_w1, (output_dim, input_dim), dtype=jnp.float32)
    w2 = 0.01 * jax.random.normal(k_w2, (output_dim, input_dim), dtype=jnp.float32)
    b = jnp.ones((output_dim,), dtype=jnp.float32)

    x = jax.random.normal(k_x, (batch, input_dim), dtype=jnp.float32)

    # One-time packing (kept out of the per-call hot path).
    wcat, bpad, d_out = prepare_mylinear_params(w1, w2, b)

    out = mylinear_forward(x, wcat, bpad, d_out)
    out = jax.block_until_ready(out)

    # Pure-JAX f32 reference. bf16 MXU inputs + f32 accumulation give ~1e-3
    # level deviations vs. the pure-f32 reference, so tolerance reflects that.
    ref = x @ w1.T + (x * x) @ w2.T + b
    assert out.shape == (batch, output_dim)
    assert jnp.allclose(out, ref, atol=1e-2, rtol=1e-2)

    print("KERNEL_OK")
</pallas_src>

<mosaic_0001>
module attributes {stable_mosaic.version = 11 : i64} {
  func.func @_mylinear_kernel(%arg0: i32, %arg1: memref<8x32xf32, #tpu.memory_space<vmem>>, %arg2: memref<64x128xbf16, #tpu.memory_space<vmem>>, %arg3: memref<1x128xf32, #tpu.memory_space<vmem>>, %arg4: memref<8x128xf32, #tpu.memory_space<vmem>>) attributes {dimension_semantics = [#tpu.dimension_semantics<parallel>], iteration_bounds = array<i64: 1>, scalar_prefetch = 0 : i64, scratch_operands = 0 : i64, tpu.core_type = #tpu.core_type<tc>, window_params = [{transform_indices = @transform_0, window_bounds = array<i64: 8, 32>}, {pipeline_mode = #tpu.pipeline_mode<synchronous>, transform_indices = @transform_1, window_bounds = array<i64: 64, 128>}, {pipeline_mode = #tpu.pipeline_mode<synchronous>, transform_indices = @transform_2, window_bounds = array<i64: 1, 128>}, {transform_indices = @transform_3, window_bounds = array<i64: 8, 128>}]} {
    %c0 = arith.constant 0 : index
    %c0_0 = arith.constant 0 : index
    %0 = vector.load %arg1[%c0, %c0_0] : memref<8x32xf32, #tpu.memory_space<vmem>>, vector<8x32xf32>
    %1 = arith.mulf %0, %0 : vector<8x32xf32>
    %2 = tpu.concatenate %0, %1 in 1 : vector<8x32xf32>, vector<8x32xf32> -> vector<8x64xf32>
    %3 = arith.truncf %2 : vector<8x64xf32> to vector<8x64xbf16>
    %c0_1 = arith.constant 0 : index
    %c0_2 = arith.constant 0 : index
    %4 = vector.load %arg2[%c0_1, %c0_2] : memref<64x128xbf16, #tpu.memory_space<vmem>>, vector<64x128xbf16>
    %cst = arith.constant dense<0.000000e+00> : vector<8x128xf32>
    %5 = tpu.matmul %3, %4, %cst {dimension_numbers = #tpu.dot_dimension_numbers<[1], [0], [0], [1], [0, 0, 1, 1], [], []>} : vector<8x64xbf16>, vector<64x128xbf16>, vector<8x128xf32> -> vector<8x128xf32>
    %c0_3 = arith.constant 0 : index
    %c0_4 = arith.constant 0 : index
    %6 = vector.load %arg3[%c0_3, %c0_4] : memref<1x128xf32, #tpu.memory_space<vmem>>, vector<1x128xf32>
    %7 = vector.broadcast %6 : vector<1x128xf32> to vector<8x128xf32>
    %8 = arith.addf %5, %7 : vector<8x128xf32>
    %c0_5 = arith.constant 0 : index
    %c0_6 = arith.constant 0 : index
    %9 = vector.load %arg4[%c0_5, %c0_6] : memref<8x128xf32, #tpu.memory_space<vmem>>, vector<8x128xf32>
    tpu.vector_store %arg4[%c0_5, %c0_6], %8 {strides = array<i32>} : memref<8x128xf32, #tpu.memory_space<vmem>>, vector<8x128xf32>,
    return
  }
  func.func @transform_0(%arg0: i32) -> (i32, i32) {
    %c0_i32 = arith.constant 0 : i32
    %c0_i32_0 = arith.constant 0 : i32
    return %arg0, %c0_i32 : i32, i32
  }
  func.func @transform_1(%arg0: i32) -> (i32, i32) {
    %c0_i32 = arith.constant 0 : i32
    %c0_i32_0 = arith.constant 0 : i32
    %c0_i32_1 = arith.constant 0 : i32
    return %c0_i32, %c0_i32_0 : i32, i32
  }
  func.func @transform_2(%arg0: i32) -> (i32, i32) {
    %c0_i32 = arith.constant 0 : i32
    %c0_i32_0 = arith.constant 0 : i32
    %c0_i32_1 = arith.constant 0 : i32
    return %c0_i32, %c0_i32_0 : i32, i32
  }
  func.func @transform_3(%arg0: i32) -> (i32, i32) {
    %c0_i32 = arith.constant 0 : i32
    %c0_i32_0 = arith.constant 0 : i32
    return %arg0, %c0_i32 : i32, i32
  }
}

</mosaic_0001>

<llo_original>
// kernel: tpu_custom_call.1
$region0: #{tpu_custom_call.1}
  #allocation0 [shape = 'u32[]', space=smem, size = 0x4, offset = 0x4, fixed_abs, tag = 'smem constant byte address 0x4 - core index']
  #allocation1 [shape = 'u32[144,128]{1,0:T(1,128)}', space=vmem, size = 0x12000, scoped, tag = 'internal scratch']
  %s0 = inlined_call_operand.hbm [shape: f32[8,32], index: 0, kind: input, shape index: {}]
  %s1 = inlined_call_operand.hbm [shape: bf16[64,128], index: 1, kind: input, shape index: {}]
  %s2 = inlined_call_operand.vmem [shape: f32[1,128], index: 2, kind: input, shape index: {}]
  %s3 = inlined_call_operand.hbm [shape: f32[8,128], index: 3, kind: output, shape index: {}]
  %s4 = sld [smem:[#allocation0]]
  $region30: #{tpu_custom_call.1} parent=0
    _
  %s6 = ssub.s32 1, %s4
  %s7 = scalar_select 0, %s6, %s4
  $region1: #{tpu_custom_call.1} parent=0
    #allocation2 [shape = 'u8[4096]{0}', space=vmem, size = 0x1000, scoped, tag = 'input window, operand 0, single buffered']
    #allocation3 [shape = 's32[1]{0}', space=sflag, size = 0x4, scoped, tag = 'scoped memory for tpu_custom_call.1']
    #allocation4 [shape = 's32[1]{0}', space=sflag, size = 0x4, scoped, tag = 'scoped memory for tpu_custom_call.1']
    #allocation5 [shape = 'u8[16384]{0}', space=vmem, size = 0x4000, scoped, tag = 'input window, operand 1, single buffered']
    #allocation6 [shape = 's32[1]{0}', space=sflag, size = 0x4, scoped, tag = 'scoped memory for tpu_custom_call.1']
    #allocation7 [shape = 'u8[4096]{0}', space=vmem, size = 0x1000, scoped, tag = 'output window, operand 0, single buffered']
    %8 = vsyncpa [#allocation3], 0
    %9 = vsyncpa [#allocation6], 0
    %10 = vsyncpa [#allocation4], 0
    // Predicated region
    $region2: #{tpu_custom_call.1} parent=1 // pred_check
      _
    $region3: #{tpu_custom_call.1} parent=1 // pred_check_branch
      %12 = sbr.rel (0) target = $region5
    $region4: #{tpu_custom_call.1} parent=1 // pred_region
      %s14 = ssub.s32 128, 128
      %15 = vsyncadd [#allocation3], %s14
      %s17 = sshll.u32 [#allocation2], 4
      %s18 = int_to_ptr.vmem [resolvable:$true] %s17
      %20 = dma.hbm_to_vmem [thread:$0]  %s0, 128, %s18, [#allocation3]
    $region5: #{tpu_custom_call.1} parent=1 // pred_fallthru
      _
    // Predicated region
    $region6: #{tpu_custom_call.1} parent=1 // pred_check
      _
    $region7: #{tpu_custom_call.1} parent=1 // pred_check_branch
      %22 = sbr.rel (0) target = $region9
    $region8: #{tpu_custom_call.1} parent=1 // pred_region
      %s24 = ssub.s32 512, 512
      %25 = vsyncadd [#allocation6], %s24
      %s26 = sshll.u32 [#allocation5], 4
      %s27 = int_to_ptr.vmem [resolvable:$true] %s26
      %32 = dma.hbm_to_vmem [thread:$0]  %s1, 512, %s27, [#allocation6], 64, 64, 4
    $region9: #{tpu_custom_call.1} parent=1 // pred_fallthru
      _
    // Predicated region
    $region10: #{tpu_custom_call.1} parent=1 // pred_check
      _
    $region11: #{tpu_custom_call.1} parent=1 // pred_check_branch
      %34 = sbr.rel (0) target = $region13
    $region12: #{tpu_custom_call.1} parent=1 // pred_region
      _
    $region13: #{tpu_custom_call.1} parent=1 // pred_fallthru
      _
    // Predicated region
    $region14: #{tpu_custom_call.1} parent=1 // pred_check
      _
    $region15: #{tpu_custom_call.1} parent=1 // pred_check_branch
      %36 = sbr.rel (0) target = $region17
    $region16: #{tpu_custom_call.1} parent=1 // pred_region
      %37 = dma.done [#allocation3], 128
    $region17: #{tpu_custom_call.1} parent=1 // pred_fallthru
      _
    // Predicated region
    $region18: #{tpu_custom_call.1} parent=1 // pred_check
      _
    $region19: #{tpu_custom_call.1} parent=1 // pred_check_branch
      %39 = sbr.rel (0) target = $region21
    $region20: #{tpu_custom_call.1} parent=1 // pred_region
      %40 = dma.done [#allocation6], 512
    $region21: #{tpu_custom_call.1} parent=1 // pred_fallthru
      _
    %v42 = vld [vmem:[#allocation2] sm:$0xff]
    %v43 = vmul.f32 %v42, %v42
    %45 = vrot.lane.b32.xlu0 %v43, 32
    %v46 = vpop.permute.xlu0 %45
    %vm48 = vcmask 261120
    %v49 = vsel %vm48, %v42, %v46
    %v50 = vpack.c.bf16 %v49, %v49
    %v51 = vld [vmem:[#allocation5] sm:$0xf]
    %v52 = vld [vmem:[#allocation5 + $0x4] sm:$0xf]
    %v53 = vld [vmem:[#allocation5 + $0x8] sm:$0xf]
    %v54 = vld [vmem:[#allocation5 + $0xc] sm:$0xf]
    %v55 = vld [vmem:[#allocation5 + $0x10] sm:$0xf]
    %v56 = vld [vmem:[#allocation5 + $0x14] sm:$0xf]
    %v57 = vld [vmem:[#allocation5 + $0x18] sm:$0xf]
    %v58 = vld [vmem:[#allocation5 + $0x1c] sm:$0xf]
    %v59 = vld [vmem:[%s2] sm:$0x1]
    %v61 = vlaneseq
    %v62 = vshrl.u32 %v61, 7
    %v63 = vsub.s32 0, %v62
    %v64 = vrot.slane %v59, %v63
    %v74 = vunpack.c.l.b16 %v51
    %v75 = vunpack.c.l.b16 %v52
    %v76 = vunpack.c.l.b16 %v53
    %v77 = vunpack.c.l.b16 %v54
    %v78 = vunpack.c.l.b16 %v55
    %v79 = vunpack.c.l.b16 %v56
    %v80 = vunpack.c.l.b16 %v57
    %v81 = vunpack.c.l.b16 %v58
    %v82 = vpack.c.b16 %v75, %v74
    %v83 = vpack.c.b16 %v77, %v76
    %v84 = vpack.c.b16 %v79, %v78
    %v85 = vpack.c.b16 %v81, %v80
    %vm90 = vcmask 523264
    %v92 = vsel %vm90, %v50, 0
    %94 = vmatprep.subr.bf16.mxu0 0
    %95 = vmatpush1.bf16.msra.mxu0 %v82
    %96 = vmatprep.subr.bf16.mxu0 0
    %97 = vmatpush1.bf16.msra.mxu0 %v83
    %98 = vmatprep.subr.bf16.mxu0 0
    %99 = vmatpush1.bf16.msra.mxu0 %v84
    %100 = vmatprep.subr.bf16.mxu0 0
    %101 = vmatpush1.bf16.msra.mxu0 %v85
    %102 = vmatprep.subr.bf16.mxu0 0
    %103 = vmatpush1.bf16.msra.mxu0 0
    %104 = vmatprep.subr.bf16.mxu0 0
    %105 = vmatpush1.bf16.msra.mxu0 0
    %106 = vmatprep.subr.bf16.mxu0 0
    %107 = vmatpush1.bf16.msra.mxu0 0
    %108 = vmatprep.subr.bf16.mxu0 0
    %109 = vmatpush1.bf16.msra.mxu0 0
    %110 = vmatprep.subr.bf16.mxu0 0
    %111 = vmatpush1.bf16.msra.mxu0 0
    %112 = vmatprep.subr.bf16.mxu0 0
    %113 = vmatpush1.bf16.msra.mxu0 0
    %114 = vmatprep.subr.bf16.mxu0 0
    %115 = vmatpush1.bf16.msra.mxu0 0
    %116 = vmatprep.subr.bf16.mxu0 0
    %117 = vmatpush1.bf16.msra.mxu0 0
    %118 = vmatprep.subr.bf16.mxu0 0
    %119 = vmatpush1.bf16.msra.mxu0 0
    %120 = vmatprep.subr.bf16.mxu0 0
    %121 = vmatpush1.bf16.msra.mxu0 0
    %122 = vmatprep.subr.bf16.mxu0 0
    %123 = vmatpush1.bf16.msra.mxu0 0
    %124 = vmatprep.subr.bf16.mxu0 0
    %125 = vmatpush1.bf16.msra.mxu0 0
    %126 = vmatprep.mubr.bf16.mxu0 0
    %127 = vmatmul.mubr.bf16.gmra.mrb[0].mxu0 %v92
    %v128 = vpop.f32.mrb[0].mxu0
    %v129 = vadd.f32 %v64, %v128
    %v130 = vpop.f32.mrb[0].mxu0
    %v131 = vpop.f32.mrb[0].mxu0
    %v132 = vpop.f32.mrb[0].mxu0
    %133 = vdwg.mxu0
    %134 = vst [vmem:[#allocation7] sm:$0xff] %v129
    // Predicated region
    $region22: #{tpu_custom_call.1} parent=1 // pred_check
      _
    $region23: #{tpu_custom_call.1} parent=1 // pred_check_branch
      %136 = sbr.rel (0) target = $region25
    $region24: #{tpu_custom_call.1} parent=1 // pred_region
      %s138 = ssub.s32 128, 128
      %139 = vsyncadd [#allocation4], %s138
      %s141 = sshll.u32 [#allocation7], 4
      %s142 = int_to_ptr.vmem [resolvable:$true] %s141
      %144 = dma.vmem_to_hbm [thread:$0]  %s142, 128, %s3, [#allocation4]
    $region25: #{tpu_custom_call.1} parent=1 // pred_fallthru
      _
    // Predicated region
    $region26: #{tpu_custom_call.1} parent=1 // pred_check
      _
    $region27: #{tpu_custom_call.1} parent=1 // pred_check_branch
      %146 = sbr.rel (0) target = $region29
    $region28: #{tpu_custom_call.1} parent=1 // pred_region
      %147 = dma.done [#allocation4], 128
    $region29: #{tpu_custom_call.1} parent=1 // pred_fallthru
      _
    %148 = vsyncpa [#allocation3], 1
    %149 = vsyncpa [#allocation6], 1
    %150 = vsyncpa [#allocation4], 1

</llo_original>
